<compile_context>
chip_gen: v6e
topology: v6e:2x2x1
jax: 0.10.0
libtpu: 0.0.40
codegen_flags: <defaults>
</compile_context>

<pallas_src>
import jax
import jax.numpy as jnp
from jax import lax
from jax.experimental import pallas as pl
from jax.experimental.pallas import tpu as pltpu


# ----------------------------- small helpers --------------------------------


def _round_up(x, m):
    return (x + m - 1) // m * m


def _vmem_budget(user_budget_bytes=None):
    """(tile-selection budget, physical VMEM capacity) in bytes."""
    cap = None
    try:
        info = pltpu.get_tpu_info()
        cap = getattr(info, "vmem_capacity_bytes", None)
    except Exception:
        cap = None
    if cap is None:
        cap = 64 << 20  # assume the smallest generation (v7x: 64 MiB per TC)
    cap = int(cap)
    if user_budget_bytes is not None:
        return int(user_budget_bytes), cap
    # <=48 MiB total footprint (safe on v7x) and never more than 70% of physical.
    return min(int(cap * 0.70), 48 << 20), cap


def _detect_core_parallel():
    """Only v7x has 2 TensorCores per chip; CORE_PARALLEL is what actually splits them."""
    try:
        kind = jax.devices()[0].device_kind.lower()
    except Exception:
        return False
    return ("v7" in kind) and hasattr(pltpu, "CORE_PARALLEL")


def _tile_footprint(tile, H, Ms, w_isz, c_isz, o_isz, has_scale, needs_dequant):
    """Conservative VMEM bytes for one pipeline configuration at O-tile `tile`."""
    f = 2 * H * tile * w_isz                                  # double-buffered weight tile
    if needs_dequant:
        f += H * tile * 4                                     # in-kernel dequant temp (f32, worst case)
    f += sum(2 * _round_up(m, 8) * H * c_isz for m in Ms)     # resident CLS activations
    f += sum(2 * _round_up(m, 8) * tile * o_isz for m in Ms)  # double-buffered out tiles
    f += 2 * 8 * tile * 4                                     # bias tile (sublane-padded)
    if has_scale:
        f += 2 * 8 * tile * 4                                 # per-channel scale tile
    return f


def _pick_tile_o(H, O_pad, Ms, w_isz, c_isz, o_isz, has_scale, needs_dequant,
                 budget_bytes, prefer_multiple_tiles=False):
    """Largest 128-aligned tile dividing O_pad whose footprint fits the budget."""
    cands = [t for t in range(128, O_pad + 1, 128) if O_pad % t == 0]
    if prefer_multiple_tiles and O_pad >= 256:
        multi = [t for t in cands if O_pad // t >= 2]
        if multi:
            cands = multi
    best = cands[0]
    for t in cands:
        if t > best and _tile_footprint(
                t, H, Ms, w_isz, c_isz, o_isz, has_scale, needs_dequant) <= budget_bytes:
            best = t
    return best


# ------------------------------ param prep ----------------------------------


def prepare_pooler_params(weight, bias, *, weight_format="bfloat16", align=128):
    """One-time (load-time) prep of the tied LinearPooler parameters.

    weight: [O, H] (nn.Linear layout), bias: [O].

    - Transposes ONCE to MXU-native [H, O] (no per-tile transpose in-kernel).
    - Pads O up to a multiple of `align` (lane-dense unmasked stores); the
      wrapper slices the padding off the kernel output.
    - weight_format:
        "float32"  : exact path
        "bfloat16" : halves weight HBM bytes (default)
        "int8"     : per-output-channel symmetric quant  (recommended v5e/v6e)
        "fp8"      : float8_e4m3 storage                  (recommended v7x)
      All formats keep f32 accumulation + f32 bias in-kernel.
    """
    O, H = weight.shape
    O_pad = _round_up(O, align)
    w = jnp.asarray(weight, jnp.float32).T                    # [H, O]
    if O_pad != O:
        w = jnp.pad(w, ((0, 0), (0, O_pad - O)))
    b = jnp.pad(jnp.asarray(bias, jnp.float32), (0, O_pad - O)).reshape(1, O_pad)

    scale = None
    if weight_format == "float32":
        w_store, compute = w, jnp.float32
    elif weight_format == "bfloat16":
        w_store, compute = w.astype(jnp.bfloat16), jnp.bfloat16
    elif weight_format == "int8":
        amax = jnp.maximum(jnp.max(jnp.abs(w), axis=0, keepdims=True), 1e-8)   # [1, O_pad]
        scale = (amax / 127.0).astype(jnp.float32)
        w_store = jnp.clip(jnp.round(w / scale), -127, 127).astype(jnp.int8)
        compute = jnp.bfloat16
    elif weight_format == "fp8":
        w_store, compute = w.astype(jnp.float8_e4m3fn), jnp.bfloat16
    else:
        raise ValueError(f"unknown weight_format: {weight_format}")

    return {"w": w_store, "b": b, "scale": scale,
            "compute_dtype": compute, "out_dim": O}


# -------------------------------- kernel ------------------------------------


def _make_pooler_kernel(n_x, has_scale):
    """Kernel refs: x_0..x_{n_x-1}, w, bias, [scale], out_0..out_{n_x-1}."""

    def kernel(*refs):
        x_refs = refs[:n_x]
        w_ref = refs[n_x]
        b_ref = refs[n_x + 1]
        s_ref = refs[n_x + 2] if has_scale else None
        out_refs = refs[n_x + 2 + (1 if has_scale else 0):]

        xd = x_refs[0].dtype
        w = w_ref[...]                                   # [H, tile_o], MXU-native layout
        if w.dtype != xd:
            # Dequant / upcast the streamed weight tile (int8 / fp8 / bf16 storage).
            w = w.astype(jnp.float32)
            if xd != jnp.float32:
                w = w.astype(xd)

        for x_ref, o_ref in zip(x_refs, out_refs):
            acc = lax.dot_general(
                x_ref[...], w,
                dimension_numbers=(((1,), (0,)), ((), ())),   # [M,H] @ [H,tile_o]
                preferred_element_type=jnp.float32,
            )
            if has_scale:
                acc = acc * s_ref[...]                   # per-output-channel dequant scale
            o_ref[...] = (acc + b_ref[...]).astype(o_ref.dtype)

    return kernel


# ------------------------------- wrapper -------------------------------------


def linear_pooler_apply(x_list, params, *, tile_o=None, vmem_budget_bytes=None,
                        core_parallel=None, out_dtype=jnp.float32):
    """Tied LinearPooler on pre-sliced CLS rows: y_i = x_i @ W.T + b (one pallas_call)."""
    w, b, scale = params["w"], params["b"], params["scale"]
    compute_dtype = params["compute_dtype"]
    O = params["out_dim"]
    H, O_pad = w.shape
    has_scale = scale is not None
    needs_dequant = jnp.dtype(w.dtype) != jnp.dtype(compute_dtype)

    xs = [jnp.asarray(x).astype(compute_dtype) for x in x_list]
    Ms = [int(x.shape[0]) for x in xs]
    assert all(x.shape[1] == H for x in xs), "hidden dim mismatch"
    n_x = len(xs)

    if core_parallel is None:
        core_parallel = _detect_core_parallel()

    budget, cap = _vmem_budget(vmem_budget_bytes)
    w_isz = jnp.dtype(w.dtype).itemsize
    c_isz = jnp.dtype(compute_dtype).itemsize
    o_isz = jnp.dtype(out_dtype).itemsize

    if tile_o is None:
        tile_o = _pick_tile_o(H, O_pad, Ms, w_isz, c_isz, o_isz, has_scale,
                              needs_dequant, budget,
                              prefer_multiple_tiles=core_parallel)
    assert tile_o % 128 == 0 and O_pad % tile_o == 0
    footprint = _tile_footprint(tile_o, H, Ms, w_isz, c_isz, o_isz,
                                has_scale, needs_dequant)
    # Raise the scoped-VMEM limit to match the actual footprint (+25% slack),
    # clamped below physical VMEM (binding on v5e 16 MiB default / v7x 64 MiB).
    vmem_limit = int(min(max(footprint + footprint // 4 + (2 << 20), 16 << 20),
                         int(cap * 0.9)))

    grid = (O_pad // tile_o,)

    in_specs = [pl.BlockSpec((m, H), lambda j: (0, 0)) for m in Ms]      # resident CLS rows
    in_specs.append(pl.BlockSpec((H, tile_o), lambda j: (0, j)))         # weight O-tile ([H,O] layout)
    in_specs.append(pl.BlockSpec((1, tile_o), lambda j: (0, j)))         # bias O-tile
    operands = xs + [w, b]
    if has_scale:
        in_specs.append(pl.BlockSpec((1, tile_o), lambda j: (0, j)))     # dequant scale O-tile
        operands.append(scale)
    out_specs = [pl.BlockSpec((m, tile_o), lambda j: (0, j)) for m in Ms]

    sem = pltpu.CORE_PARALLEL if core_parallel else "arbitrary"

    bytes_accessed = (sum(m * H * c_isz for m in Ms)
                      + H * O_pad * w_isz
                      + O_pad * 4 * (1 + (1 if has_scale else 0))
                      + sum(m * O_pad * o_isz for m in Ms))
    cost = pl.CostEstimate(flops=2 * sum(Ms) * H * O_pad,
                           transcendentals=0,
                           bytes_accessed=bytes_accessed)

    outs = pl.pallas_call(
        _make_pooler_kernel(n_x, has_scale),
        out_shape=tuple(jax.ShapeDtypeStruct((m, O_pad), out_dtype) for m in Ms),
        grid_spec=pltpu.PrefetchScalarGridSpec(
            num_scalar_prefetch=0,
            grid=grid,
            in_specs=in_specs,
            out_specs=out_specs,
        ),
        compiler_params=pltpu.CompilerParams(
            dimension_semantics=(sem,),
            vmem_limit_bytes=vmem_limit,
        ),
        cost_estimate=cost,
    )(*operands)

    return [o[:, :O] for o in outs]


def dense_model_for_inference_forward(q_hidden, p_hidden, params, **kw):
    """DenseModelForInference.forward.

    q_hidden / p_hidden are the lm_q / lm_p last_hidden_state ([B, S, H]).
    Returns (q_reps, p_reps) — the DenseOutput fields this module populates.
    The pooler is tied: both CLS-row sets go through ONE kernel so the shared
    [H, O] weight is streamed from HBM exactly once.
    """
    # TODO(synk): lm_q / lm_p (pretrained HF transformer encoders) have no clean
    # Pallas equivalent here; their last_hidden_state is treated as the input.
    if q_hidden is None and p_hidden is None:
        return None, None

    x_list, slots = [], []
    if q_hidden is not None:
        x_list.append(q_hidden[:, 0, :])   # CLS select in the wrapper: only [B,H] is DMA'd
        slots.append("q")
    if p_hidden is not None:
        x_list.append(p_hidden[:, 0, :])
        slots.append("p")

    outs = linear_pooler_apply(x_list, params, **kw)
    res = {"q": None, "p": None}
    for s, o in zip(slots, outs):
        res[s] = o
    return res["q"], res["p"]


# --------------------------------- test --------------------------------------


if __name__ == "__main__":
    # Small shapes consistent with the module (projection_in_dim=H, projection_out_dim=O).
    # O deliberately NOT 128-aligned to exercise the pad-to-lane-dense path (320 -> 384).
    B, S, H, O = 4, 8, 256, 320

    key = jax.random.PRNGKey(0)
    k1, k2, k3, k4 = jax.random.split(key, 4)

    # Synthetic "encoder outputs" (last_hidden_state for query and passage).
    q_hidden = jax.random.normal(k1, (B, S, H), dtype=jnp.float32)
    p_hidden = jax.random.normal(k2, (B, S, H), dtype=jnp.float32)

    # Deterministic tied LinearPooler parameters (nn.Linear(H, O) layout: [O, H]).
    bound = 1.0 / jnp.sqrt(H)
    pooler_w = jax.random.uniform(k3, (O, H), minval=-bound, maxval=bound, dtype=jnp.float32)
    pooler_b = jax.random.uniform(k4, (O,), minval=-bound, maxval=bound, dtype=jnp.float32)

    # Plain-JAX reference (matches the PyTorch module in f32).
    q_ref = q_hidden[:, 0, :] @ pooler_w.T + pooler_b
    p_ref = p_hidden[:, 0, :] @ pooler_w.T + pooler_b

    # --- f32 weight path (tight tolerance) ---
    params32 = prepare_pooler_params(pooler_w, pooler_b, weight_format="float32")
    q32, p32 = dense_model_for_inference_forward(q_hidden, p_hidden, params32)
    q32 = jax.block_until_ready(q32)
    p32 = jax.block_until_ready(p32)
    assert q32.shape == (B, O) and p32.shape == (B, O)
    assert jnp.allclose(q32, q_ref, atol=1e-4, rtol=1e-4)
    assert jnp.allclose(p32, p_ref, atol=1e-4, rtol=1e-4)

    # --- query-only path (passage=None, same as the PyTorch forward semantics) ---
    q_only, p_none = dense_model_for_inference_forward(q_hidden, None, params32)
    q_only = jax.block_until_ready(q_only)
    assert p_none is None
    assert jnp.allclose(q_only, q_ref, atol=1e-4, rtol=1e-4)

    # --- bf16 weight path (halves weight HBM traffic; f32 accumulate + f32 bias) ---
    params_bf = prepare_pooler_params(pooler_w, pooler_b, weight_format="bfloat16")
    q_bf, p_bf = dense_model_for_inference_forward(q_hidden, p_hidden, params_bf)
    q_bf = jax.block_until_ready(q_bf)
    p_bf = jax.block_until_ready(p_bf)
    assert jnp.allclose(q_bf, q_ref, atol=2e-2, rtol=2e-2)
    assert jnp.allclose(p_bf, p_ref, atol=2e-2, rtol=2e-2)

    # --- int8 weight path (v5e/v6e recommendation: ~2x less weight HBM traffic) ---
    params_i8 = prepare_pooler_params(pooler_w, pooler_b, weight_format="int8")
    q_i8, p_i8 = dense_model_for_inference_forward(q_hidden, p_hidden, params_i8)
    q_i8 = jax.block_until_ready(q_i8)
    p_i8 = jax.block_until_ready(p_i8)
    assert jnp.allclose(q_i8, q_ref, atol=5e-2, rtol=5e-2)
    assert jnp.allclose(p_i8, p_ref, atol=5e-2, rtol=5e-2)

    print("KERNEL_OK")
</pallas_src>

<mosaic_0001>
module attributes {stable_mosaic.version = 11 : i64} {
  func.func @kernel(%arg0: i32, %arg1: memref<4x256xf32, #tpu.memory_space<vmem>>, %arg2: memref<4x256xf32, #tpu.memory_space<vmem>>, %arg3: memref<256x384xf32, #tpu.memory_space<vmem>>, %arg4: memref<1x384xf32, #tpu.memory_space<vmem>>, %arg5: memref<4x384xf32, #tpu.memory_space<vmem>>, %arg6: memref<4x384xf32, #tpu.memory_space<vmem>>) attributes {dimension_semantics = [#tpu.dimension_semantics<arbitrary>], iteration_bounds = array<i64: 1>, scalar_prefetch = 0 : i64, scratch_operands = 0 : i64, tpu.core_type = #tpu.core_type<tc>, window_params = [{pipeline_mode = #tpu.pipeline_mode<synchronous>, transform_indices = @transform_0, window_bounds = array<i64: 4, 256>}, {pipeline_mode = #tpu.pipeline_mode<synchronous>, transform_indices = @transform_1, window_bounds = array<i64: 4, 256>}, {transform_indices = @transform_2, window_bounds = array<i64: 256, 384>}, {transform_indices = @transform_3, window_bounds = array<i64: 1, 384>}, {transform_indices = @transform_4, window_bounds = array<i64: 4, 384>}, {transform_indices = @transform_5, window_bounds = array<i64: 4, 384>}]} {
    %c0 = arith.constant 0 : index
    %c0_0 = arith.constant 0 : index
    %0 = vector.load %arg3[%c0, %c0_0] : memref<256x384xf32, #tpu.memory_space<vmem>>, vector<256x384xf32>
    %c0_1 = arith.constant 0 : index
    %c0_2 = arith.constant 0 : index
    %1 = vector.load %arg1[%c0_1, %c0_2] : memref<4x256xf32, #tpu.memory_space<vmem>>, vector<4x256xf32>
    %cst = arith.constant dense<0.000000e+00> : vector<4x384xf32>
    %2 = tpu.matmul %1, %0, %cst {dimension_numbers = #tpu.dot_dimension_numbers<[1], [0], [0], [1], [0, 0, 1, 1], [], []>} : vector<4x256xf32>, vector<256x384xf32>, vector<4x384xf32> -> vector<4x384xf32>
    %c0_3 = arith.constant 0 : index
    %c0_4 = arith.constant 0 : index
    %3 = vector.load %arg4[%c0_3, %c0_4] : memref<1x384xf32, #tpu.memory_space<vmem>>, vector<1x384xf32>
    %4 = vector.broadcast %3 : vector<1x384xf32> to vector<4x384xf32>
    %5 = arith.addf %2, %4 : vector<4x384xf32>
    %c0_5 = arith.constant 0 : index
    %c0_6 = arith.constant 0 : index
    %6 = vector.load %arg5[%c0_5, %c0_6] : memref<4x384xf32, #tpu.memory_space<vmem>>, vector<4x384xf32>
    tpu.vector_store %arg5[%c0_5, %c0_6], %5 {strides = array<i32>} : memref<4x384xf32, #tpu.memory_space<vmem>>, vector<4x384xf32>,
    %c0_7 = arith.constant 0 : index
    %c0_8 = arith.constant 0 : index
    %7 = vector.load %arg2[%c0_7, %c0_8] : memref<4x256xf32, #tpu.memory_space<vmem>>, vector<4x256xf32>
    %cst_9 = arith.constant dense<0.000000e+00> : vector<4x384xf32>
    %8 = tpu.matmul %7, %0, %cst_9 {dimension_numbers = #tpu.dot_dimension_numbers<[1], [0], [0], [1], [0, 0, 1, 1], [], []>} : vector<4x256xf32>, vector<256x384xf32>, vector<4x384xf32> -> vector<4x384xf32>
    %c0_10 = arith.constant 0 : index
    %c0_11 = arith.constant 0 : index
    %9 = vector.load %arg4[%c0_10, %c0_11] : memref<1x384xf32, #tpu.memory_space<vmem>>, vector<1x384xf32>
    %10 = vector.broadcast %9 : vector<1x384xf32> to vector<4x384xf32>
    %11 = arith.addf %8, %10 : vector<4x384xf32>
    %c0_12 = arith.constant 0 : index
    %c0_13 = arith.constant 0 : index
    %12 = vector.load %arg6[%c0_12, %c0_13] : memref<4x384xf32, #tpu.memory_space<vmem>>, vector<4x384xf32>
    tpu.vector_store %arg6[%c0_12, %c0_13], %11 {strides = array<i32>} : memref<4x384xf32, #tpu.memory_space<vmem>>, vector<4x384xf32>,
    return
  }
  func.func @transform_0(%arg0: i32) -> (i32, i32) {
    %c0_i32 = arith.constant 0 : i32
    %c0_i32_0 = arith.constant 0 : i32
    %c0_i32_1 = arith.constant 0 : i32
    return %c0_i32, %c0_i32_0 : i32, i32
  }
  func.func @transform_1(%arg0: i32) -> (i32, i32) {
    %c0_i32 = arith.constant 0 : i32
    %c0_i32_0 = arith.constant 0 : i32
    %c0_i32_1 = arith.constant 0 : i32
    return %c0_i32, %c0_i32_0 : i32, i32
  }
  func.func @transform_2(%arg0: i32) -> (i32, i32) {
    %c0_i32 = arith.constant 0 : i32
    %c0_i32_0 = arith.constant 0 : i32
    return %c0_i32, %arg0 : i32, i32
  }
  func.func @transform_3(%arg0: i32) -> (i32, i32) {
    %c0_i32 = arith.constant 0 : i32
    %c0_i32_0 = arith.constant 0 : i32
    return %c0_i32, %arg0 : i32, i32
  }
  func.func @transform_4(%arg0: i32) -> (i32, i32) {
    %c0_i32 = arith.constant 0 : i32
    %c0_i32_0 = arith.constant 0 : i32
    return %c0_i32, %arg0 : i32, i32
  }
  func.func @transform_5(%arg0: i32) -> (i32, i32) {
    %c0_i32 = arith.constant 0 : i32
    %c0_i32_0 = arith.constant 0 : i32
    return %c0_i32, %arg0 : i32, i32
  }
}

</mosaic_0001>

<llo_original>
// kernel: tpu_custom_call.1
$region0: #{tpu_custom_call.1}
  #allocation0 [shape = 'u32[]', space=smem, size = 0x4, offset = 0x4, fixed_abs, tag = 'smem constant byte address 0x4 - core index']
  #allocation1 [shape = 'u32[144,128]{1,0:T(1,128)}', space=vmem, size = 0x12000, scoped, tag = 'internal scratch']
  %s0 = inlined_call_operand.hbm [shape: f32[4,256], index: 0, kind: input, shape index: {}]
  %s1 = inlined_call_operand.hbm [shape: f32[4,256], index: 1, kind: input, shape index: {}]
  %s2 = inlined_call_operand.hbm [shape: f32[256,384], index: 2, kind: input, shape index: {}]
  %s3 = inlined_call_operand.vmem [shape: f32[1,384], index: 3, kind: input, shape index: {}]
  %s4 = inlined_call_operand.hbm [shape: f32[4,384], index: 4, kind: output, shape index: {0}]
  %s5 = inlined_call_operand.hbm [shape: f32[4,384], index: 5, kind: output, shape index: {1}]
  %6 = xla_tuple %s4, %s5
  %s7 = sld [smem:[#allocation0]]
  $region46: #{tpu_custom_call.1} parent=0
    _
  %s9 = ssub.s32 1, %s7
  %s10 = scalar_select 0, %s9, %s7
  $region1: #{tpu_custom_call.1} parent=0
    #allocation2 [shape = 'u8[4096]{0}', space=vmem, size = 0x1000, scoped, tag = 'input window, operand 0, single buffered']
    #allocation3 [shape = 's32[1]{0}', space=sflag, size = 0x4, scoped, tag = 'scoped memory for tpu_custom_call.1']
    #allocation4 [shape = 's32[1]{0}', space=sflag, size = 0x4, scoped, tag = 'scoped memory for tpu_custom_call.1']
    #allocation5 [shape = 'u8[4096]{0}', space=vmem, size = 0x1000, scoped, tag = 'input window, operand 1, single buffered']
    #allocation6 [shape = 's32[1]{0}', space=sflag, size = 0x4, scoped, tag = 'scoped memory for tpu_custom_call.1']
    #allocation7 [shape = 'u8[393216]{0}', space=vmem, size = 0x60000, scoped, tag = 'input window, operand 2, single buffered']
    #allocation8 [shape = 'u8[6144]{0}', space=vmem, size = 0x1800, scoped, tag = 'output window, operand 0, single buffered']
    #allocation9 [shape = 'u8[6144]{0}', space=vmem, size = 0x1800, scoped, tag = 'output window, operand 1, single buffered']
    #allocation10 [shape = 's32[1]{0}', space=sflag, size = 0x4, scoped, tag = 'scoped memory for tpu_custom_call.1']
    %11 = vsyncpa [#allocation3], 0
    %12 = vsyncpa [#allocation6], 0
    %13 = vsyncpa [#allocation4], 0
    %14 = vsyncpa [#allocation10], 0
    // Predicated region
    $region2: #{tpu_custom_call.1} parent=1 // pred_check
      _
    $region3: #{tpu_custom_call.1} parent=1 // pred_check_branch
      %16 = sbr.rel (0) target = $region5
    $region4: #{tpu_custom_call.1} parent=1 // pred_region
      %s18 = ssub.s32 128, 128
      %19 = vsyncadd [#allocation3], %s18
      %s21 = sshll.u32 [#allocation2], 4
      %s22 = int_to_ptr.vmem [resolvable:$true] %s21
      %24 = dma.hbm_to_vmem [thread:$0]  %s0, 128, %s22, [#allocation3]
    $region5: #{tpu_custom_call.1} parent=1 // pred_fallthru
      _
    // Predicated region
    $region6: #{tpu_custom_call.1} parent=1 // pred_check
      _
    $region7: #{tpu_custom_call.1} parent=1 // pred_check_branch
      %26 = sbr.rel (0) target = $region9
    $region8: #{tpu_custom_call.1} parent=1 // pred_region
      %s28 = ssub.s32 128, 128
      %29 = vsyncadd [#allocation6], %s28
      %s31 = sshll.u32 [#allocation5], 4
      %s32 = int_to_ptr.vmem [resolvable:$true] %s31
      %34 = dma.hbm_to_vmem [thread:$0]  %s1, 128, %s32, [#allocation6]
    $region9: #{tpu_custom_call.1} parent=1 // pred_fallthru
      _
    // Predicated region
    $region10: #{tpu_custom_call.1} parent=1 // pred_check
      _
    $region11: #{tpu_custom_call.1} parent=1 // pred_check_branch
      %36 = sbr.rel (0) target = $region13
    $region12: #{tpu_custom_call.1} parent=1 // pred_region
      %s38 = ssub.s32 12288, 12288
      %39 = vsyncadd [#allocation6], %s38
      %s40 = sshll.u32 [#allocation7], 4
      %s41 = int_to_ptr.vmem [resolvable:$true] %s40
      %46 = dma.hbm_to_vmem [thread:$0]  %s2, 12288, %s41, [#allocation6], 384, 384, 24
    $region13: #{tpu_custom_call.1} parent=1 // pred_fallthru
      _
    // Predicated region
    $region14: #{tpu_custom_call.1} parent=1 // pred_check
      _
    $region15: #{tpu_custom_call.1} parent=1 // pred_check_branch
      %48 = sbr.rel (0) target = $region17
    $region16: #{tpu_custom_call.1} parent=1 // pred_region
      _
    $region17: #{tpu_custom_call.1} parent=1 // pred_fallthru
      _
    // Predicated region
    $region18: #{tpu_custom_call.1} parent=1 // pred_check
      _
    $region19: #{tpu_custom_call.1} parent=1 // pred_check_branch
      %50 = sbr.rel (0) target = $region21
    $region20: #{tpu_custom_call.1} parent=1 // pred_region
      %51 = dma.done [#allocation3], 128
    $region21: #{tpu_custom_call.1} parent=1 // pred_fallthru
      _
    // Predicated region
    $region22: #{tpu_custom_call.1} parent=1 // pred_check
      _
    $region23: #{tpu_custom_call.1} parent=1 // pred_check_branch
      %53 = sbr.rel (0) target = $region25
    $region24: #{tpu_custom_call.1} parent=1 // pred_region
      %54 = dma.done [#allocation6], 128
    $region25: #{tpu_custom_call.1} parent=1 // pred_fallthru
      _
    // Predicated region
    $region26: #{tpu_custom_call.1} parent=1 // pred_check
      _
    $region27: #{tpu_custom_call.1} parent=1 // pred_check_branch
      %56 = sbr.rel (0) target = $region29
    $region28: #{tpu_custom_call.1} parent=1 // pred_region
      %57 = dma.done [#allocation6], 12288
    $region29: #{tpu_custom_call.1} parent=1 // pred_fallthru
      _
    %v58 = vld [vmem:[#allocation7] sm:$0xff]
    %v59 = vld [vmem:[#allocation7 + $0x8] sm:$0xff]
    %v60 = vld [vmem:[#allocation7 + $0x10] sm:$0xff]
    %v61 = vld [vmem:[#allocation7 + $0x18] sm:$0xff]
    %v62 = vld [vmem:[#allocation7 + $0x20] sm:$0xff]
    %v63 = vld [vmem:[#allocation7 + $0x28] sm:$0xff]
    %v64 = vld [vmem:[#allocation7 + $0x30] sm:$0xff]
    %v65 = vld [vmem:[#allocation7 + $0x38] sm:$0xff]
    %v66 = vld [vmem:[#allocation7 + $0x40] sm:$0xff]
    %v67 = vld [vmem:[#allocation7 + $0x48] sm:$0xff]
    %v68 = vld [vmem:[#allocation7 + $0x50] sm:$0xff]
    %v69 = vld [vmem:[#allocation7 + $0x58] sm:$0xff]
    %v70 = vld [vmem:[#allocation7 + $0x60] sm:$0xff]
    %v71 = vld [vmem:[#allocation7 + $0x68] sm:$0xff]
    %v72 = vld [vmem:[#allocation7 + $0x70] sm:$0xff]
    %v73 = vld [vmem:[#allocation7 + $0x78] sm:$0xff]
    %v74 = vld [vmem:[#allocation7 + $0x80] sm:$0xff]
    %v75 = vld [vmem:[#allocation7 + $0x88] sm:$0xff]
    %v76 = vld [vmem:[#allocation7 + $0x90] sm:$0xff]
    %v77 = vld [vmem:[#allocation7 + $0x98] sm:$0xff]
    %v78 = vld [vmem:[#allocation7 + $0xa0] sm:$0xff]
    %v79 = vld [vmem:[#allocation7 + $0xa8] sm:$0xff]
    %v80 = vld [vmem:[#allocation7 + $0xb0] sm:$0xff]
    %v81 = vld [vmem:[#allocation7 + $0xb8] sm:$0xff]
    %v82 = vld [vmem:[#allocation7 + $0xc0] sm:$0xff]
    %v83 = vld [vmem:[#allocation7 + $0xc8] sm:$0xff]
    %v84 = vld [vmem:[#allocation7 + $0xd0] sm:$0xff]
    %v85 = vld [vmem:[#allocation7 + $0xd8] sm:$0xff]
    %v86 = vld [vmem:[#allocation7 + $0xe0] sm:$0xff]
    %v87 = vld [vmem:[#allocation7 + $0xe8] sm:$0xff]
    %v88 = vld [vmem:[#allocation7 + $0xf0] sm:$0xff]
    %v89 = vld [vmem:[#allocation7 + $0xf8] sm:$0xff]
    %v90 = vld [vmem:[#allocation7 + $0x100] sm:$0xff]
    %v91 = vld [vmem:[#allocation7 + $0x108] sm:$0xff]
    %v92 = vld [vmem:[#allocation7 + $0x110] sm:$0xff]
    %v93 = vld [vmem:[#allocation7 + $0x118] sm:$0xff]
    %v94 = vld [vmem:[#allocation7 + $0x120] sm:$0xff]
    %v95 = vld [vmem:[#allocation7 + $0x128] sm:$0xff]
    %v96 = vld [vmem:[#allocation7 + $0x130] sm:$0xff]
    %v97 = vld [vmem:[#allocation7 + $0x138] sm:$0xff]
    %v98 = vld [vmem:[#allocation7 + $0x140] sm:$0xff]
    %v99 = vld [vmem:[#allocation7 + $0x148] sm:$0xff]
    %v100 = vld [vmem:[#allocation7 + $0x150] sm:$0xff]
    %v101 = vld [vmem:[#allocation7 + $0x158] sm:$0xff]
    %v102 = vld [vmem:[#allocation7 + $0x160] sm:$0xff]
    %v103 = vld [vmem:[#allocation7 + $0x168] sm:$0xff]
    %v104 = vld [vmem:[#allocation7 + $0x170] sm:$0xff]
    %v105 = vld [vmem:[#allocation7 + $0x178] sm:$0xff]
    %v106 = vld [vmem:[#allocation7 + $0x180] sm:$0xff]
    %v107 = vld [vmem:[#allocation7 + $0x188] sm:$0xff]
    %v108 = vld [vmem:[#allocation7 + $0x190] sm:$0xff]
    %v109 = vld [vmem:[#allocation7 + $0x198] sm:$0xff]
    %v110 = vld [vmem:[#allocation7 + $0x1a0] sm:$0xff]
    %v111 = vld [vmem:[#allocation7 + $0x1a8] sm:$0xff]
    %v112 = vld [vmem:[#allocation7 + $0x1b0] sm:$0xff]
    %v113 = vld [vmem:[#allocation7 + $0x1b8] sm:$0xff]
    %v114 = vld [vmem:[#allocation7 + $0x1c0] sm:$0xff]
    %v115 = vld [vmem:[#allocation7 + $0x1c8] sm:$0xff]
    %v116 = vld [vmem:[#allocation7 + $0x1d0] sm:$0xff]
    %v117 = vld [vmem:[#allocation7 + $0x1d8] sm:$0xff]
    %v118 = vld [vmem:[#allocation7 + $0x1e0] sm:$0xff]
    %v119 = vld [vmem:[#allocation7 + $0x1e8] sm:$0xff]
    %v120 = vld [vmem:[#allocation7 + $0x1f0] sm:$0xff]
    %v121 = vld [vmem:[#allocation7 + $0x1f8] sm:$0xff]
    %v122 = vld [vmem:[#allocation7 + $0x200] sm:$0xff]
    %v123 = vld [vmem:[#allocation7 + $0x208] sm:$0xff]
    %v124 = vld [vmem:[#allocation7 + $0x210] sm:$0xff]
    %v125 = vld [vmem:[#allocation7 + $0x218] sm:$0xff]
    %v126 = vld [vmem:[#allocation7 + $0x220] sm:$0xff]
    %v127 = vld [vmem:[#allocation7 + $0x228] sm:$0xff]
    %v128 = vld [vmem:[#allocation7 + $0x230] sm:$0xff]
    %v129 = vld [vmem:[#allocation7 + $0x238] sm:$0xff]
    %v130 = vld [vmem:[#allocation7 + $0x240] sm:$0xff]
    %v131 = vld [vmem:[#allocation7 + $0x248] sm:$0xff]
    %v132 = vld [vmem:[#allocation7 + $0x250] sm:$0xff]
    %v133 = vld [vmem:[#allocation7 + $0x258] sm:$0xff]
    %v134 = vld [vmem:[#allocation7 + $0x260] sm:$0xff]
    %v135 = vld [vmem:[#allocation7 + $0x268] sm:$0xff]
    %v136 = vld [vmem:[#allocation7 + $0x270] sm:$0xff]
    %v137 = vld [vmem:[#allocation7 + $0x278] sm:$0xff]
    %v138 = vld [vmem:[#allocation7 + $0x280] sm:$0xff]
    %v139 = vld [vmem:[#allocation7 + $0x288] sm:$0xff]
    %v140 = vld [vmem:[#allocation7 + $0x290] sm:$0xff]
    %v141 = vld [vmem:[#allocation7 + $0x298] sm:$0xff]
    %v142 = vld [vmem:[#allocation7 + $0x2a0] sm:$0xff]
    %v143 = vld [vmem:[#allocation7 + $0x2a8] sm:$0xff]
    %v144 = vld [vmem:[#allocation7 + $0x2b0] sm:$0xff]
    %v145 = vld [vmem:[#allocation7 + $0x2b8] sm:$0xff]
    %v146 = vld [vmem:[#allocation7 + $0x2c0] sm:$0xff]
    %v147 = vld [vmem:[#allocation7 + $0x2c8] sm:$0xff]
    %v148 = vld [vmem:[#allocation7 + $0x2d0] sm:$0xff]
    %v149 = vld [vmem:[#allocation7 + $0x2d8] sm:$0xff]
    %v150 = vld [vmem:[#allocation7 + $0x2e0] sm:$0xff]
    %v151 = vld [vmem:[#allocation7 + $0x2e8] sm:$0xff]
    %v152 = vld [vmem:[#allocation7 + $0x2f0] sm:$0xff]
    %v153 = vld [vmem:[#allocation7 + $0x2f8] sm:$0xff]
    %v154 = vld [vmem:[#allocation2] sm:$0xff]
    %v155 = vld [vmem:[%s3] sm:$0x7]
    %v157 = vlaneseq
    %v158 = vshrl.u32 %v157, 7
    %v159 = vsub.s32 0, %v158
    %v160 = vrot.slane %v155, %v159
    %v161 = vlaneseq
    %v162 = vshrl.u32 %v161, 7
    %v163 = vsub.s32 1, %v162
    %v164 = vrot.slane %v155, %v163
    %v165 = vlaneseq
    %v166 = vshrl.u32 %v165, 7
    %v167 = vsub.s32 2, %v166
    %v168 = vrot.slane %v155, %v167
    %v173 = vcombine.high %v154, %v154
    %175 = vmatprep.subr.mxu0 %v104
    %176 = vmatpush1.msra.mxu0 %v103
    %177 = vmatprep.subr.mxu0 %v101
    %178 = vmatpush1.msra.mxu0 %v100
    %179 = vmatprep.subr.mxu0 %v98
    %180 = vmatpush1.msra.mxu0 %v97
    %181 = vmatprep.subr.mxu0 %v95
    %182 = vmatpush1.msra.mxu0 %v94
    %183 = vmatprep.subr.mxu0 %v92
    %184 = vmatpush1.msra.mxu0 %v91
    %185 = vmatprep.subr.mxu0 %v89
    %186 = vmatpush1.msra.mxu0 %v88
    %187 = vmatprep.subr.mxu0 %v86
    %188 = vmatpush1.msra.mxu0 %v85
    %189 = vmatprep.subr.mxu0 %v83
    %190 = vmatpush1.msra.mxu0 %v82
    %191 = vmatprep.subr.mxu0 %v80
    %192 = vmatpush1.msra.mxu0 %v79
    %193 = vmatprep.subr.mxu0 %v77
    %194 = vmatpush1.msra.mxu0 %v76
    %195 = vmatprep.subr.mxu0 %v74
    %196 = vmatpush1.msra.mxu0 %v73
    %197 = vmatprep.subr.mxu0 %v71
    %198 = vmatpush1.msra.mxu0 %v70
    %199 = vmatprep.subr.mxu0 %v68
    %200 = vmatpush1.msra.mxu0 %v67
    %201 = vmatprep.subr.mxu0 %v65
    %202 = vmatpush1.msra.mxu0 %v64
    %203 = vmatprep.subr.mxu0 %v62
    %204 = vmatpush1.msra.mxu0 %v61
    %205 = vmatprep.subr.mxu0 %v59
    %206 = vmatpush1.msra.mxu0 %v58
    %207 = vmatprep.subr.mxu0 %v152
    %208 = vmatpush2.msra.mxu0 %v151
    %209 = vmatprep.subr.mxu0 %v149
    %210 = vmatpush2.msra.mxu0 %v148
    %211 = vmatprep.subr.mxu0 %v146
    %212 = vmatpush2.msra.mxu0 %v145
    %213 = vmatprep.subr.mxu0 %v143
    %214 = vmatpush2.msra.mxu0 %v142
    %215 = vmatprep.subr.mxu0 %v140
    %216 = vmatpush2.msra.mxu0 %v139
    %217 = vmatprep.subr.mxu0 %v137
    %218 = vmatpush2.msra.mxu0 %v136
    %219 = vmatprep.subr.mxu0 %v134
    %220 = vmatpush2.msra.mxu0 %v133
    %221 = vmatprep.subr.mxu0 %v131
    %222 = vmatpush2.msra.mxu0 %v130
    %223 = vmatprep.subr.mxu0 %v128
    %224 = vmatpush2.msra.mxu0 %v127
    %225 = vmatprep.subr.mxu0 %v125
    %226 = vmatpush2.msra.mxu0 %v124
    %227 = vmatprep.subr.mxu0 %v122
    %228 = vmatpush2.msra.mxu0 %v121
    %229 = vmatprep.subr.mxu0 %v119
    %230 = vmatpush2.msra.mxu0 %v118
    %231 = vmatprep.subr.mxu0 %v116
    %232 = vmatpush2.msra.mxu0 %v115
    %233 = vmatprep.subr.mxu0 %v113
    %234 = vmatpush2.msra.mxu0 %v112
    %235 = vmatprep.subr.mxu0 %v110
    %236 = vmatpush2.msra.mxu0 %v109
    %237 = vmatprep.subr.mxu0 %v107
    %238 = vmatpush2.msra.mxu0 %v106
    %239 = vmatprep.mubr.f32.mxu0 %v173
    %240 = vmatmul.mubr.f32.gmra.mxu0 %v154
    %v241 = vpop.f32.mrf.mxu0
    %v242 = vadd.f32 %v160, %v241
    %v243 = vpop.f32.mrf.mxu0
    %v244 = vadd.f32 %v164, %v243
    %245 = vdwg.mxu0
    %246 = vmatprep.subr.mxu0 0.0
    %247 = vmatpush1.msra.mxu0 %v105
    %248 = vmatprep.subr.mxu0 0.0
    %249 = vmatpush1.msra.mxu0 %v102
    %250 = vmatprep.subr.mxu0 0.0
    %251 = vmatpush1.msra.mxu0 %v99
    %252 = vmatprep.subr.mxu0 0.0
    %253 = vmatpush1.msra.mxu0 %v96
    %254 = vmatprep.subr.mxu0 0.0
    %255 = vmatpush1.msra.mxu0 %v93
    %256 = vmatprep.subr.mxu0 0.0
    %257 = vmatpush1.msra.mxu0 %v90
    %258 = vmatprep.subr.mxu0 0.0
    %259 = vmatpush1.msra.mxu0 %v87
    %260 = vmatprep.subr.mxu0 0.0
    %261 = vmatpush1.msra.mxu0 %v84
    %262 = vmatprep.subr.mxu0 0.0
    %263 = vmatpush1.msra.mxu0 %v81
    %264 = vmatprep.subr.mxu0 0.0
    %265 = vmatpush1.msra.mxu0 %v78
    %266 = vmatprep.subr.mxu0 0.0
    %267 = vmatpush1.msra.mxu0 %v75
    %268 = vmatprep.subr.mxu0 0.0
    %269 = vmatpush1.msra.mxu0 %v72
    %270 = vmatprep.subr.mxu0 0.0
    %271 = vmatpush1.msra.mxu0 %v69
    %272 = vmatprep.subr.mxu0 0.0
    %273 = vmatpush1.msra.mxu0 %v66
    %274 = vmatprep.subr.mxu0 0.0
    %275 = vmatpush1.msra.mxu0 %v63
    %276 = vmatprep.subr.mxu0 0.0
    %277 = vmatpush1.msra.mxu0 %v60
    %278 = vmatprep.subr.mxu0 0.0
    %279 = vmatpush2.msra.mxu0 %v153
    %280 = vmatprep.subr.mxu0 0.0
    %281 = vmatpush2.msra.mxu0 %v150
    %282 = vmatprep.subr.mxu0 0.0
    %283 = vmatpush2.msra.mxu0 %v147
    %284 = vmatprep.subr.mxu0 0.0
    %285 = vmatpush2.msra.mxu0 %v144
    %286 = vmatprep.subr.mxu0 0.0
    %287 = vmatpush2.msra.mxu0 %v141
    %288 = vmatprep.subr.mxu0 0.0
    %289 = vmatpush2.msra.mxu0 %v138
    %290 = vmatprep.subr.mxu0 0.0
    %291 = vmatpush2.msra.mxu0 %v135
    %292 = vmatprep.subr.mxu0 0.0
    %293 = vmatpush2.msra.mxu0 %v132
    %294 = vmatprep.subr.mxu0 0.0
    %295 = vmatpush2.msra.mxu0 %v129
    %296 = vmatprep.subr.mxu0 0.0
    %297 = vmatpush2.msra.mxu0 %v126
    %298 = vmatprep.subr.mxu0 0.0
    %299 = vmatpush2.msra.mxu0 %v123
    %300 = vmatprep.subr.mxu0 0.0
    %301 = vmatpush2.msra.mxu0 %v120
    %302 = vmatprep.subr.mxu0 0.0
    %303 = vmatpush2.msra.mxu0 %v117
    %304 = vmatprep.subr.mxu0 0.0
    %305 = vmatpush2.msra.mxu0 %v114
    %306 = vmatprep.subr.mxu0 0.0
    %307 = vmatpush2.msra.mxu0 %v111
    %308 = vmatprep.subr.mxu0 0.0
    %309 = vmatpush2.msra.mxu0 %v108
    %310 = vmatprep.mubr.f32.mxu0 %v173
    %311 = vmatmul.mubr.f32.gmra.mxu0 %v154
    %v312 = vpop.f32.mrf.mxu0
    %v313 = vadd.f32 %v168, %v312
    %v314 = vpop.f32.mrf.mxu0
    %315 = vdwg.mxu0
    %v318 = vcombine.low %v242, %v244
    %320 = vst [vmem:[#allocation8] sm:$0xff] %v318
    %321 = vst [vmem:[#allocation8 + $0x8] sm:$0xf] %v313
    %v322 = vld [vmem:[#allocation5] sm:$0xff]
    %v323 = vld [vmem:[%s3] sm:$0x7]
    %v325 = vlaneseq
    %v326 = vshrl.u32 %v325, 7
    %v327 = vsub.s32 0, %v326
    %v328 = vrot.slane %v323, %v327
    %v329 = vlaneseq
    %v330 = vshrl.u32 %v329, 7
    %v331 = vsub.s32 1, %v330
    %v332 = vrot.slane %v323, %v331
    %v333 = vlaneseq
    %v334 = vshrl.u32 %v333, 7
    %v335 = vsub.s32 2, %v334
    %v336 = vrot.slane %v323, %v335
    %v341 = vcombine.high %v322, %v322
    %343 = vmatprep.subr.mxu0 %v104
    %344 = vmatpush1.msra.mxu0 %v103
    %345 = vmatprep.subr.mxu0 %v101
    %346 = vmatpush1.msra.mxu0 %v100
    %347 = vmatprep.subr.mxu0 %v98
    %348 = vmatpush1.msra.mxu0 %v97
    %349 = vmatprep.subr.mxu0 %v95
    %350 = vmatpush1.msra.mxu0 %v94
    %351 = vmatprep.subr.mxu0 %v92
    %352 = vmatpush1.msra.mxu0 %v91
    %353 = vmatprep.subr.mxu0 %v89
    %354 = vmatpush1.msra.mxu0 %v88
    %355 = vmatprep.subr.mxu0 %v86
    %356 = vmatpush1.msra.mxu0 %v85
    %357 = vmatprep.subr.mxu0 %v83
    %358 = vmatpush1.msra.mxu0 %v82
    %359 = vmatprep.subr.mxu0 %v80
    %360 = vmatpush1.msra.mxu0 %v79
    %361 = vmatprep.subr.mxu0 %v77
    %362 = vmatpush1.msra.mxu0 %v76
    %363 = vmatprep.subr.mxu0 %v74
    %364 = vmatpush1.msra.mxu0 %v73
    %365 = vmatprep.subr.mxu0 %v71
    %366 = vmatpush1.msra.mxu0 %v70
    %367 = vmatprep.subr.mxu0 %v68
    %368 = vmatpush1.msra.mxu0 %v67
    %369 = vmatprep.subr.mxu0 %v65
    %370 = vmatpush1.msra.mxu0 %v64
    %371 = vmatprep.subr.mxu0 %v62
    %372 = vmatpush1.msra.mxu0 %v61
    %373 = vmatprep.subr.mxu0 %v59
    %374 = vmatpush1.msra.mxu0 %v58
    %375 = vmatprep.subr.mxu0 %v152
    %376 = vmatpush2.msra.mxu0 %v151
    %377 = vmatprep.subr.mxu0 %v149
    %378 = vmatpush2.msra.mxu0 %v148
    %379 = vmatprep.subr.mxu0 %v146
    %380 = vmatpush2.msra.mxu0 %v145
    %381 = vmatprep.subr.mxu0 %v143
    %382 = vmatpush2.msra.mxu0 %v142
    %383 = vmatprep.subr.mxu0 %v140
    %384 = vmatpush2.msra.mxu0 %v139
    %385 = vmatprep.subr.mxu0 %v137
    %386 = vmatpush2.msra.mxu0 %v136
    %387 = vmatprep.subr.mxu0 %v134
    %388 = vmatpush2.msra.mxu0 %v133
    %389 = vmatprep.subr.mxu0 %v131
    %390 = vmatpush2.msra.mxu0 %v130
    %391 = vmatprep.subr.mxu0 %v128
    %392 = vmatpush2.msra.mxu0 %v127
    %393 = vmatprep.subr.mxu0 %v125
    %394 = vmatpush2.msra.mxu0 %v124
    %395 = vmatprep.subr.mxu0 %v122
    %396 = vmatpush2.msra.mxu0 %v121
    %397 = vmatprep.subr.mxu0 %v119
    %398 = vmatpush2.msra.mxu0 %v118
    %399 = vmatprep.subr.mxu0 %v116
    %400 = vmatpush2.msra.mxu0 %v115
    %401 = vmatprep.subr.mxu0 %v113
    %402 = vmatpush2.msra.mxu0 %v112
    %403 = vmatprep.subr.mxu0 %v110
    %404 = vmatpush2.msra.mxu0 %v109
    %405 = vmatprep.subr.mxu0 %v107
    %406 = vmatpush2.msra.mxu0 %v106
    %407 = vmatprep.mubr.f32.mxu0 %v341
    %408 = vmatmul.mubr.f32.gmra.mxu0 %v322
    %v409 = vpop.f32.mrf.mxu0
    %v410 = vadd.f32 %v328, %v409
    %v411 = vpop.f32.mrf.mxu0
    %v412 = vadd.f32 %v332, %v411
    %413 = vdwg.mxu0
    %414 = vmatprep.subr.mxu0 0.0
    %415 = vmatpush1.msra.mxu0 %v105
    %416 = vmatprep.subr.mxu0 0.0
    %417 = vmatpush1.msra.mxu0 %v102
    %418 = vmatprep.subr.mxu0 0.0
    %419 = vmatpush1.msra.mxu0 %v99
    %420 = vmatprep.subr.mxu0 0.0
    %421 = vmatpush1.msra.mxu0 %v96
    %422 = vmatprep.subr.mxu0 0.0
    %423 = vmatpush1.msra.mxu0 %v93
    %424 = vmatprep.subr.mxu0 0.0
    %425 = vmatpush1.msra.mxu0 %v90
    %426 = vmatprep.subr.mxu0 0.0
    %427 = vmatpush1.msra.mxu0 %v87
    %428 = vmatprep.subr.mxu0 0.0
    %429 = vmatpush1.msra.mxu0 %v84
    %430 = vmatprep.subr.mxu0 0.0
    %431 = vmatpush1.msra.mxu0 %v81
    %432 = vmatprep.subr.mxu0 0.0
    %433 = vmatpush1.msra.mxu0 %v78
    %434 = vmatprep.subr.mxu0 0.0
    %435 = vmatpush1.msra.mxu0 %v75
    %436 = vmatprep.subr.mxu0 0.0
    %437 = vmatpush1.msra.mxu0 %v72
    %438 = vmatprep.subr.mxu0 0.0
    %439 = vmatpush1.msra.mxu0 %v69
    %440 = vmatprep.subr.mxu0 0.0
    %441 = vmatpush1.msra.mxu0 %v66
    %442 = vmatprep.subr.mxu0 0.0
    %443 = vmatpush1.msra.mxu0 %v63
    %444 = vmatprep.subr.mxu0 0.0
    %445 = vmatpush1.msra.mxu0 %v60
    %446 = vmatprep.subr.mxu0 0.0
    %447 = vmatpush2.msra.mxu0 %v153
    %448 = vmatprep.subr.mxu0 0.0
    %449 = vmatpush2.msra.mxu0 %v150
    %450 = vmatprep.subr.mxu0 0.0
    %451 = vmatpush2.msra.mxu0 %v147
    %452 = vmatprep.subr.mxu0 0.0
    %453 = vmatpush2.msra.mxu0 %v144
    %454 = vmatprep.subr.mxu0 0.0
    %455 = vmatpush2.msra.mxu0 %v141
    %456 = vmatprep.subr.mxu0 0.0
    %457 = vmatpush2.msra.mxu0 %v138
    %458 = vmatprep.subr.mxu0 0.0
    %459 = vmatpush2.msra.mxu0 %v135
    %460 = vmatprep.subr.mxu0 0.0
    %461 = vmatpush2.msra.mxu0 %v132
    %462 = vmatprep.subr.mxu0 0.0
    %463 = vmatpush2.msra.mxu0 %v129
    %464 = vmatprep.subr.mxu0 0.0
    %465 = vmatpush2.msra.mxu0 %v126
    %466 = vmatprep.subr.mxu0 0.0
    %467 = vmatpush2.msra.mxu0 %v123
    %468 = vmatprep.subr.mxu0 0.0
    %469 = vmatpush2.msra.mxu0 %v120
    %470 = vmatprep.subr.mxu0 0.0
    %471 = vmatpush2.msra.mxu0 %v117
    %472 = vmatprep.subr.mxu0 0.0
    %473 = vmatpush2.msra.mxu0 %v114
    %474 = vmatprep.subr.mxu0 0.0
    %475 = vmatpush2.msra.mxu0 %v111
    %476 = vmatprep.subr.mxu0 0.0
    %477 = vmatpush2.msra.mxu0 %v108
    %478 = vmatprep.mubr.f32.mxu0 %v341
    %479 = vmatmul.mubr.f32.gmra.mxu0 %v322
    %v480 = vpop.f32.mrf.mxu0
    %v481 = vadd.f32 %v336, %v480
    %v482 = vpop.f32.mrf.mxu0
    %483 = vdwg.mxu0
    %v486 = vcombine.low %v410, %v412
    %488 = vst [vmem:[#allocation9] sm:$0xff] %v486
    %489 = vst [vmem:[#allocation9 + $0x8] sm:$0xf] %v481
    // Predicated region
    $region30: #{tpu_custom_call.1} parent=1 // pred_check
      _
    $region31: #{tpu_custom_call.1} parent=1 // pred_check_branch
      %491 = sbr.rel (0) target = $region33
    $region32: #{tpu_custom_call.1} parent=1 // pred_region
      %s493 = ssub.s32 192, 192
      %494 = vsyncadd [#allocation4], %s493
      %s496 = sshll.u32 [#allocation8], 4
      %s497 = int_to_ptr.vmem [resolvable:$true] %s496
      %499 = dma.vmem_to_hbm [thread:$0]  %s497, 192, %s4, [#allocation4]
    $region33: #{tpu_custom_call.1} parent=1 // pred_fallthru
      _
    // Predicated region
    $region34: #{tpu_custom_call.1} parent=1 // pred_check
      _
    $region35: #{tpu_custom_call.1} parent=1 // pred_check_branch
      %501 = sbr.rel (0) target = $region37
    $region36: #{tpu_custom_call.1} parent=1 // pred_region
      %s503 = ssub.s32 192, 192
      %504 = vsyncadd [#allocation10], %s503
      %s506 = sshll.u32 [#allocation9], 4
      %s507 = int_to_ptr.vmem [resolvable:$true] %s506
      %509 = dma.vmem_to_hbm [thread:$0]  %s507, 192, %s5, [#allocation10]
    $region37: #{tpu_custom_call.1} parent=1 // pred_fallthru
      _
    // Predicated region
    $region38: #{tpu_custom_call.1} parent=1 // pred_check
      _
    $region39: #{tpu_custom_call.1} parent=1 // pred_check_branch
      %511 = sbr.rel (0) target = $region41
    $region40: #{tpu_custom_call.1} parent=1 // pred_region
      %512 = dma.done [#allocation4], 192
    $region41: #{tpu_custom_call.1} parent=1 // pred_fallthru
      _
    // Predicated region
    $region42: #{tpu_custom_call.1} parent=1 // pred_check
      _
    $region43: #{tpu_custom_call.1} parent=1 // pred_check_branch
      %514 = sbr.rel (0) target = $region45
    $region44: #{tpu_custom_call.1} parent=1 // pred_region
      %515 = dma.done [#allocation10], 192
    $region45: #{tpu_custom_call.1} parent=1 // pred_fallthru
      _
    %516 = vsyncpa [#allocation3], 1
    %517 = vsyncpa [#allocation6], 1
    %518 = vsyncpa [#allocation4], 1
    %519 = vsyncpa [#allocation10], 1

</llo_original>
